<compile_context>
chip_gen: v5e
topology: v5e:2x2
jax: 0.10.0
libtpu: 0.0.40
codegen_flags: <defaults>
</compile_context>

<pallas_src>
import functools

import numpy as np

import jax
import jax.numpy as jnp
from jax.experimental import pallas as pl
from jax.experimental.pallas import tpu as pltpu

EPS_BN = 1e-5     # nn.BatchNorm2d default eps
H = 8             # spatial size fixed by VSS x_size=(8, 8)
W = 8

# Index layout of the packed scalar-parameter vector (lives in SMEM).
_C_D, _BN_G, _BN_B, _B_C3 = range(4)


# ------------------------------ fused kernel ---------------------------------

def _ccm_kernel(x_ref, a_d_ref, a_eff_ref, a_c3_ref, bmap_ref, scal_ref, o_ref):
    """Whole CCM forward on a (1, N) lane-dense pixel slab (N = B*H*W).

    All 3x3/padding=1 convolutions arrive pre-folded (weights x shift/border
    masks) as (N, N) bf16 matrices, so the kernel is three MXU dots plus a
    handful of VPU ops for BatchNorm and the residual/fusion tail.
    """
    x = x_ref[...]                                     # (1, N) f32 input slab
    x_bf = x.astype(jnp.bfloat16)

    # --- x_D1 = DEPTHWISECONV(x_i) = pointwise(depthwise(x_i)), fully folded --
    x_d1 = jnp.dot(x_bf, a_d_ref[...],
                   preferred_element_type=jnp.float32) + scal_ref[_C_D]

    # --- BatchNorm2d(1): training-mode batch stats (biased var) ---------------
    # Correct only because the whole pixel axis is resident in this block; if
    # this kernel is ever tiled over pixels the statistics need a separate
    # reduction pass (or an "arbitrary" reduction grid axis).
    mean = jnp.mean(x)
    var = jnp.mean((x - mean) ** 2)
    inv = jax.lax.rsqrt(var + EPS_BN)
    xn = (x - mean) * (inv * scal_ref[_BN_G]) + scal_ref[_BN_B]

    # --- conv1x1 (1->32) + conv3x3 (32->1), collapsed to one dot + bias map ---
    x1 = jnp.dot(xn.astype(jnp.bfloat16), a_eff_ref[...],
                 preferred_element_type=jnp.float32) + bmap_ref[...]

    # --- PatchEmbed -> VSSBlock -> PatchUnEmbed -------------------------------
    # PatchEmbed / PatchUnEmbed are flatten / unflatten (identity round trip).
    # TODO(synk): VSSBlock (SS2D selective scan) reference was not provided;
    # kept as identity on x1.  (The 1->32->1 algebraic fold above is exact
    # only under this identity stub.)
    x_u1_pre = x1 + x                                  # unembed + x_i

    # --- x_U1 = conv3(x_U1_pre) + x_U1_pre ------------------------------------
    c3 = jnp.dot(x_u1_pre.astype(jnp.bfloat16), a_c3_ref[...],
                 preferred_element_type=jnp.float32) + scal_ref[_B_C3]
    x_u1 = c3 + x_u1_pre

    # --- SI / CI fusion --------------------------------------------------------
    # TODO(synk): SI / CI module definitions were not provided; treated as
    # identity maps, which collapses the tail to  out = 2 * x_D1 * x_U1.
    o_ref[...] = 2.0 * x_d1 * x_u1


# --------------------- host-side shift/border mask tables ---------------------

def _shift_and_valid_masks(batch):
    """Numpy 0/1 tables for the nine 3x3 taps on the flat (b, h, w) pixel axis.

    Tap t = kh*3 + kw (PyTorch weight order), offsets (dh, dw) = (kh-1, kw-1):
    output pixel q reads source pixel m = q + dh*W + dw, masked at image
    borders (zero padding), never across images.

    Returns:
      shifts: (9, N, N) float32, S_t[m, q] = 1 iff pixel m feeds pixel q via tap t.
      valids: (9, 1, N) float32, V_t[q]    = 1 iff tap t is inside the image at q.
    """
    n = batch * H * W
    m = np.arange(n)[:, None]            # source pixel index
    q = np.arange(n)[None, :]            # destination pixel index
    h_q = (q // W) % H                   # dest row (batch stripped by % H)
    w_q = q % W                          # dest column
    shifts, valids = [], []
    for t in range(9):
        dh, dw = t // 3 - 1, t % 3 - 1
        cond = (m - q) == (dh * W + dw)
        v = np.ones((1, n), dtype=bool)
        if dh < 0:
            v = v & (h_q >= -dh)
        elif dh > 0:
            v = v & (h_q < H - dh)
        if dw < 0:
            v = v & (w_q >= -dw)
        elif dw > 0:
            v = v & (w_q < W - dw)
        shifts.append((cond & v).astype(np.float32))
        valids.append(v.astype(np.float32))
    return np.stack(shifts), np.stack(valids)


# ------------------------------ wrapper ---------------------------------------

def ccm_forward(x_i, kparams):
    """x_i: (B, 1, 8, 8) f32;  kparams: output of pack_params(params, B)."""
    B, C, Hi, Wi = x_i.shape
    assert C == 1 and Hi == H and Wi == W
    n = B * Hi * Wi
    assert kparams["a_d"].shape == (n, n), "kparams packed for a different batch"
    x_flat = x_i.reshape(1, n)     # (b, h, w) pixel order; metadata-only reshape

    vmem = pl.BlockSpec(memory_space=pltpu.MemorySpace.VMEM)
    smem = pl.BlockSpec(memory_space=pltpu.MemorySpace.SMEM)

    out_flat = pl.pallas_call(
        _ccm_kernel,
        out_shape=jax.ShapeDtypeStruct((1, n), jnp.float32),
        in_specs=[vmem, vmem, vmem, vmem, vmem, smem],
        out_specs=vmem,
    )(x_flat, kparams["a_d"], kparams["a_eff"], kparams["a_c3"],
      kparams["bias_map"], kparams["scal"])

    return out_flat.reshape(B, 1, Hi, Wi)   # metadata-only reshape back to NCHW


# --------------------------- parameters ---------------------------------------

def init_params(key):
    """PyTorch-shaped parameters for all CCM sub-modules."""
    ks = jax.random.split(key, 10)

    def nrm(k, shape, scale=0.1):
        return scale * jax.random.normal(k, shape, dtype=jnp.float32)

    return {
        # DEPTHWISECONV(1, 1): depthwise 3x3 + pointwise 1x1
        "w_dw": nrm(ks[0], (1, 1, 3, 3)), "b_dw": nrm(ks[1], (1,)),
        "w_pw": nrm(ks[2], (1, 1, 1, 1)), "b_pw": nrm(ks[3], (1,)),
        # BatchNorm2d(1) affine (gamma=1, beta=0)
        "bn_gamma": jnp.ones((1,), jnp.float32),
        "bn_beta": jnp.zeros((1,), jnp.float32),
        # conv1x1: 1 -> 32
        "w_1x1": nrm(ks[4], (32, 1, 1, 1)), "b_1x1": nrm(ks[5], (32,)),
        # conv3x3: 32 -> 1
        "w_3x3": nrm(ks[6], (1, 32, 3, 3)), "b_3x3": nrm(ks[7], (1,)),
        # conv3: 1 -> 1
        "w_c3": nrm(ks[8], (1, 1, 3, 3)), "b_c3": nrm(ks[9], (1,)),
    }


def pack_params(p, batch):
    """One-time host-side repack: fold conv weights into (N, N) matrices."""
    shifts_np, valids_np = _shift_and_valid_masks(batch)
    shifts = jnp.asarray(shifts_np)                    # (9, N, N)
    valids = jnp.asarray(valids_np)                    # (9, 1, N)

    w_dw = p["w_dw"].reshape(9)                        # (kh, kw) row-major taps
    w_pw = p["w_pw"].reshape(())
    w_c3 = p["w_c3"].reshape(9)
    w_1x1 = p["w_1x1"].reshape(32)
    b_1x1 = p["b_1x1"].reshape(32)
    w_3x3 = p["w_3x3"].reshape(32, 9)                  # (cin, tap)

    # DEPTHWISECONV: pointwise(depthwise(x)) = x @ (w_pw * sum_t w_dw[t] S_t) + c_D
    a_d = w_pw * jnp.einsum("t,tmq->mq", w_dw, shifts)
    c_d = w_pw * p["b_dw"][0] + p["b_pw"][0]

    # conv1x1(1->32) then conv3x3(32->1):
    #   w_eff[t] = sum_c w33[c,t] * w1x1[c]      (effective 1->1 3x3 kernel)
    #   bias_map = sum_t (sum_c w33[c,t]*b1x1[c]) * valid_t + b_3x3
    w_eff = jnp.einsum("ct,c->t", w_3x3, w_1x1)        # (9,)
    b_eff = jnp.einsum("ct,c->t", w_3x3, b_1x1)        # (9,)
    a_eff = jnp.einsum("t,tmq->mq", w_eff, shifts)
    bias_map = jnp.einsum("t,tmq->mq", b_eff, valids) + p["b_3x3"][0]  # (1, N)

    # conv3 (1->1, 3x3, padding=1)
    a_c3 = jnp.einsum("t,tmq->mq", w_c3, shifts)

    return {
        "a_d": a_d.astype(jnp.bfloat16),               # (N, N)
        "a_eff": a_eff.astype(jnp.bfloat16),           # (N, N)
        "a_c3": a_c3.astype(jnp.bfloat16),             # (N, N)
        "bias_map": bias_map.astype(jnp.float32),      # (1, N)
        "scal": jnp.stack([c_d, p["bn_gamma"][0], p["bn_beta"][0],
                           p["b_c3"][0]]).astype(jnp.float32),  # (4,) SMEM
    }


# --------------------------- pure-JAX reference -------------------------------

def ccm_forward_ref(x_i, p):
    """Plain-JAX reference with the same VSS/SI/CI identity stubs."""
    def conv(x, w, b, pad):
        y = jax.lax.conv_general_dilated(
            x, w, (1, 1), ((pad, pad), (pad, pad)),
            dimension_numbers=("NCHW", "OIHW", "NCHW"))
        return y + b.reshape(1, -1, 1, 1)

    x_d1 = conv(conv(x_i, p["w_dw"], p["b_dw"], 1), p["w_pw"], p["b_pw"], 0)
    mean = jnp.mean(x_i)
    var = jnp.mean((x_i - mean) ** 2)
    xn = (x_i - mean) * jax.lax.rsqrt(var + EPS_BN) * p["bn_gamma"][0] + p["bn_beta"][0]
    x32 = conv(xn, p["w_1x1"], p["b_1x1"], 0)
    x1 = conv(x32, p["w_3x3"], p["b_3x3"], 1)
    x_u1 = x1 + x_i                                   # VSS path as identity
    x_u1 = conv(x_u1, p["w_c3"], p["b_c3"], 1) + x_u1
    return 2.0 * x_d1 * x_u1                          # SI/CI as identity


# ------------------------------ main -------------------------------------------

if __name__ == "__main__":
    key = jax.random.PRNGKey(0)
    k_x, k_p = jax.random.split(key)
    # batch=2, 1 channel, 8x8 spatial (matches VSS x_size=(8, 8)); 128 pixels.
    x_i = jax.random.normal(k_x, (2, 1, 8, 8), dtype=jnp.float32)
    params = init_params(k_p)
    kparams = pack_params(params, batch=x_i.shape[0])

    fwd = jax.jit(functools.partial(ccm_forward, kparams=kparams))
    out = fwd(x_i)
    jax.block_until_ready(out)

    assert out.shape == (2, 1, 8, 8), out.shape
    assert jnp.all(jnp.isfinite(out))

    ref = ccm_forward_ref(x_i, params)
    max_err = float(jnp.max(jnp.abs(out - ref)))
    assert jnp.allclose(out, ref, atol=1e-2, rtol=1e-2), max_err

    print("KERNEL_OK")
</pallas_src>

<mosaic_0001>
module attributes {stable_mosaic.version = 11 : i64} {
  func.func @_ccm_kernel(%arg0: memref<1x128xf32, #tpu.memory_space<vmem>>, %arg1: memref<128x128xbf16, #tpu.memory_space<vmem>>, %arg2: memref<128x128xbf16, #tpu.memory_space<vmem>>, %arg3: memref<128x128xbf16, #tpu.memory_space<vmem>>, %arg4: memref<1x128xf32, #tpu.memory_space<vmem>>, %arg5: memref<4xf32, #tpu.memory_space<smem>>, %arg6: memref<1x128xf32, #tpu.memory_space<vmem>>) attributes {dimension_semantics = [], scalar_prefetch = 0 : i64, scratch_operands = 0 : i64, tpu.core_type = #tpu.core_type<tc>} {
    %c0 = arith.constant 0 : index
    %c0_0 = arith.constant 0 : index
    %0 = vector.load %arg0[%c0, %c0_0] : memref<1x128xf32, #tpu.memory_space<vmem>>, vector<1x128xf32>
    %1 = arith.truncf %0 : vector<1x128xf32> to vector<1x128xbf16>
    %c0_1 = arith.constant 0 : index
    %c0_2 = arith.constant 0 : index
    %2 = vector.load %arg1[%c0_1, %c0_2] : memref<128x128xbf16, #tpu.memory_space<vmem>>, vector<128x128xbf16>
    %cst = arith.constant dense<0.000000e+00> : vector<1x128xf32>
    %3 = tpu.matmul %1, %2, %cst {dimension_numbers = #tpu.dot_dimension_numbers<[1], [0], [0], [1], [0, 0, 1, 1], [], []>} : vector<1x128xbf16>, vector<128x128xbf16>, vector<1x128xf32> -> vector<1x128xf32>
    %c0_3 = arith.constant 0 : index
    %4 = memref.load %arg5[%c0_3] : memref<4xf32, #tpu.memory_space<smem>>
    %5 = vector.broadcast %4 : f32 to vector<1x128xf32>
    %6 = arith.addf %3, %5 : vector<1x128xf32>
    %7 = vector.shape_cast %0 : vector<1x128xf32> to vector<1x1x128xf32>
    %cst_4 = arith.constant dense<0.000000e+00> : vector<1xf32>
    %8 = vector.multi_reduction <add>, %7, %cst_4 [1, 2] : vector<1x1x128xf32> to vector<1xf32>
    %9 = vector.shape_cast %8 : vector<1xf32> to vector<1x1x1xf32>
    %10 = vector.extract %9[0, 0, 0] : f32 from vector<1x1x1xf32>
    %cst_5 = arith.constant 1.280000e+02 : f32
    %11 = arith.divf %10, %cst_5 : f32
    %12 = vector.broadcast %11 : f32 to vector<1x128xf32>
    %13 = arith.subf %0, %12 : vector<1x128xf32>
    %14 = arith.mulf %13, %13 : vector<1x128xf32>
    %15 = vector.shape_cast %14 : vector<1x128xf32> to vector<1x1x128xf32>
    %cst_6 = arith.constant dense<0.000000e+00> : vector<1xf32>
    %16 = vector.multi_reduction <add>, %15, %cst_6 [1, 2] : vector<1x1x128xf32> to vector<1xf32>
    %17 = vector.shape_cast %16 : vector<1xf32> to vector<1x1x1xf32>
    %18 = vector.extract %17[0, 0, 0] : f32 from vector<1x1x1xf32>
    %cst_7 = arith.constant 1.280000e+02 : f32
    %19 = arith.divf %18, %cst_7 : f32
    %cst_8 = arith.constant 9.99999974E-6 : f32
    %20 = arith.addf %19, %cst_8 : f32
    %21 = math.rsqrt %20 : f32
    %22 = vector.broadcast %11 : f32 to vector<1x128xf32>
    %23 = arith.subf %0, %22 : vector<1x128xf32>
    %c1 = arith.constant 1 : index
    %24 = memref.load %arg5[%c1] : memref<4xf32, #tpu.memory_space<smem>>
    %25 = arith.mulf %21, %24 : f32
    %26 = vector.broadcast %25 : f32 to vector<1x128xf32>
    %27 = arith.mulf %23, %26 : vector<1x128xf32>
    %c2 = arith.constant 2 : index
    %28 = memref.load %arg5[%c2] : memref<4xf32, #tpu.memory_space<smem>>
    %29 = vector.broadcast %28 : f32 to vector<1x128xf32>
    %30 = arith.addf %27, %29 : vector<1x128xf32>
    %31 = arith.truncf %30 : vector<1x128xf32> to vector<1x128xbf16>
    %c0_9 = arith.constant 0 : index
    %c0_10 = arith.constant 0 : index
    %32 = vector.load %arg2[%c0_9, %c0_10] : memref<128x128xbf16, #tpu.memory_space<vmem>>, vector<128x128xbf16>
    %cst_11 = arith.constant dense<0.000000e+00> : vector<1x128xf32>
    %33 = tpu.matmul %31, %32, %cst_11 {dimension_numbers = #tpu.dot_dimension_numbers<[1], [0], [0], [1], [0, 0, 1, 1], [], []>} : vector<1x128xbf16>, vector<128x128xbf16>, vector<1x128xf32> -> vector<1x128xf32>
    %c0_12 = arith.constant 0 : index
    %c0_13 = arith.constant 0 : index
    %34 = vector.load %arg4[%c0_12, %c0_13] : memref<1x128xf32, #tpu.memory_space<vmem>>, vector<1x128xf32>
    %35 = arith.addf %33, %34 : vector<1x128xf32>
    %36 = arith.addf %35, %0 : vector<1x128xf32>
    %37 = arith.truncf %36 : vector<1x128xf32> to vector<1x128xbf16>
    %c0_14 = arith.constant 0 : index
    %c0_15 = arith.constant 0 : index
    %38 = vector.load %arg3[%c0_14, %c0_15] : memref<128x128xbf16, #tpu.memory_space<vmem>>, vector<128x128xbf16>
    %cst_16 = arith.constant dense<0.000000e+00> : vector<1x128xf32>
    %39 = tpu.matmul %37, %38, %cst_16 {dimension_numbers = #tpu.dot_dimension_numbers<[1], [0], [0], [1], [0, 0, 1, 1], [], []>} : vector<1x128xbf16>, vector<128x128xbf16>, vector<1x128xf32> -> vector<1x128xf32>
    %c3 = arith.constant 3 : index
    %40 = memref.load %arg5[%c3] : memref<4xf32, #tpu.memory_space<smem>>
    %41 = vector.broadcast %40 : f32 to vector<1x128xf32>
    %42 = arith.addf %39, %41 : vector<1x128xf32>
    %43 = arith.addf %42, %36 : vector<1x128xf32>
    %cst_17 = arith.constant 2.000000e+00 : f32
    %44 = vector.broadcast %cst_17 : f32 to vector<1x128xf32>
    %45 = arith.mulf %44, %6 : vector<1x128xf32>
    %46 = arith.mulf %45, %43 : vector<1x128xf32>
    %c0_18 = arith.constant 0 : index
    %c0_19 = arith.constant 0 : index
    %47 = vector.load %arg6[%c0_18, %c0_19] : memref<1x128xf32, #tpu.memory_space<vmem>>, vector<1x128xf32>
    tpu.vector_store %arg6[%c0_18, %c0_19], %46 {strides = array<i32>} : memref<1x128xf32, #tpu.memory_space<vmem>>, vector<1x128xf32>,
    return
  }
}

</mosaic_0001>

<llo_original>
// kernel: ccm_forward.1
$region0: #{ccm_forward.1}
  #allocation0 [shape = 'u32[]', space=smem, size = 0x4, offset = 0x4, fixed_abs, tag = 'smem constant byte address 0x4 - core index']
  #allocation1 [shape = 'u32[72,128]{1,0:T(1,128)}', space=vmem, size = 0x9000, scoped, tag = 'internal scratch']
  %s0 = inlined_call_operand.vmem [shape: f32[1,128], index: 0, kind: input, shape index: {}]
  %s1 = inlined_call_operand.hbm [shape: bf16[128,128], index: 1, kind: input, shape index: {}]
  %s2 = inlined_call_operand.hbm [shape: bf16[128,128], index: 2, kind: input, shape index: {}]
  %s3 = inlined_call_operand.hbm [shape: bf16[128,128], index: 3, kind: input, shape index: {}]
  %s4 = inlined_call_operand.vmem [shape: f32[1,128], index: 4, kind: input, shape index: {}]
  %s5 = inlined_call_operand.vmem [shape: f32[4], index: 5, kind: input, shape index: {}]
  %s6 = inlined_call_operand.vmem [shape: f32[1,128], index: 6, kind: output, shape index: {}]
  %s7 = sld [smem:[#allocation0]]
  $region50: #{ccm_forward.1} parent=0
    _
  %s9 = ssub.s32 1, %s7
  %s10 = scalar_select 0, %s9, %s7
  $region1: #{ccm_forward.1} parent=0
    #allocation2 [shape = 'u8[32768]{0}', space=vmem, size = 0x8000, scoped, tag = 'input window, operand 1, single buffered']
    #allocation3 [shape = 's32[1]{0}', space=sflag, size = 0x4, scoped, tag = 'scoped memory for ccm_forward.1']
    #allocation4 [shape = 's32[1]{0}', space=sflag, size = 0x4, scoped, tag = 'scoped memory for ccm_forward.1']
    #allocation5 [shape = 'u8[32768]{0}', space=vmem, size = 0x8000, scoped, tag = 'input window, operand 2, single buffered']
    #allocation6 [shape = 's32[1]{0}', space=sflag, size = 0x4, scoped, tag = 'scoped memory for ccm_forward.1']
    #allocation7 [shape = 'u8[32768]{0}', space=vmem, size = 0x8000, scoped, tag = 'input window, operand 3, single buffered']
    #allocation8 [shape = 'u8[512]{0}', space=smem, size = 0x200, scoped, tag = 'input window, operand 5, single buffered']
    %11 = vsyncpa [#allocation3], 0
    %12 = vsyncpa [#allocation6], 0
    %13 = vsyncpa [#allocation4], 0
    // Predicated region
    $region2: #{ccm_forward.1} parent=1 // pred_check
      _
    $region3: #{ccm_forward.1} parent=1 // pred_check_branch
      %15 = sbr.rel (0) target = $region5
    $region4: #{ccm_forward.1} parent=1 // pred_region
      _
    $region5: #{ccm_forward.1} parent=1 // pred_fallthru
      _
    // Predicated region
    $region6: #{ccm_forward.1} parent=1 // pred_check
      _
    $region7: #{ccm_forward.1} parent=1 // pred_check_branch
      %17 = sbr.rel (0) target = $region9
    $region8: #{ccm_forward.1} parent=1 // pred_region
      %19 = vsyncadd [#allocation3], 0
      %s20 = sshll.u32 %s1, 4
      %s21 = int_to_ptr.hbm [resolvable:$true] %s20
      %s22 = sshll.u32 [#allocation2], 4
      %s23 = int_to_ptr.vmem [resolvable:$true] %s22
      %28 = dma.hbm_to_vmem [thread:$0]  %s21, 1024, %s23, [#allocation3], 64, 64, 4
    $region9: #{ccm_forward.1} parent=1 // pred_fallthru
      _
    // Predicated region
    $region10: #{ccm_forward.1} parent=1 // pred_check
      _
    $region11: #{ccm_forward.1} parent=1 // pred_check_branch
      %30 = sbr.rel (0) target = $region13
    $region12: #{ccm_forward.1} parent=1 // pred_region
      %32 = vsyncadd [#allocation6], 0
      %s33 = sshll.u32 %s2, 4
      %s34 = int_to_ptr.hbm [resolvable:$true] %s33
      %s35 = sshll.u32 [#allocation5], 4
      %s36 = int_to_ptr.vmem [resolvable:$true] %s35
      %41 = dma.hbm_to_vmem [thread:$0]  %s34, 1024, %s36, [#allocation6], 64, 64, 4
    $region13: #{ccm_forward.1} parent=1 // pred_fallthru
      _
    // Predicated region
    $region14: #{ccm_forward.1} parent=1 // pred_check
      _
    $region15: #{ccm_forward.1} parent=1 // pred_check_branch
      %43 = sbr.rel (0) target = $region17
    $region16: #{ccm_forward.1} parent=1 // pred_region
      %45 = vsyncadd [#allocation6], 0
      %s46 = sshll.u32 %s3, 4
      %s47 = int_to_ptr.hbm [resolvable:$true] %s46
      %s48 = sshll.u32 [#allocation7], 4
      %s49 = int_to_ptr.vmem [resolvable:$true] %s48
      %54 = dma.hbm_to_vmem [thread:$0]  %s47, 1024, %s49, [#allocation6], 64, 64, 4
    $region17: #{ccm_forward.1} parent=1 // pred_fallthru
      _
    // Predicated region
    $region18: #{ccm_forward.1} parent=1 // pred_check
      _
    $region19: #{ccm_forward.1} parent=1 // pred_check_branch
      %56 = sbr.rel (0) target = $region21
    $region20: #{ccm_forward.1} parent=1 // pred_region
      _
    $region21: #{ccm_forward.1} parent=1 // pred_fallthru
      _
    // Predicated region
    $region22: #{ccm_forward.1} parent=1 // pred_check
      _
    $region23: #{ccm_forward.1} parent=1 // pred_check_branch
      %58 = sbr.rel (0) target = $region25
    $region24: #{ccm_forward.1} parent=1 // pred_region
      %60 = vsyncadd [#allocation4], 0
      %s62 = sshll.u32 %s5, 4
      %s63 = int_to_ptr.vmem [resolvable:$true] %s62
      %65 = dma.vmem_to_smem %s63, 16, [#allocation8], [#allocation4]
    $region25: #{ccm_forward.1} parent=1 // pred_fallthru
      _
    // Predicated region
    $region26: #{ccm_forward.1} parent=1 // pred_check
      _
    $region27: #{ccm_forward.1} parent=1 // pred_check_branch
      %67 = sbr.rel (0) target = $region29
    $region28: #{ccm_forward.1} parent=1 // pred_region
      %69 = dma.done [#allocation3], 1024
    $region29: #{ccm_forward.1} parent=1 // pred_fallthru
      _
    // Predicated region
    $region30: #{ccm_forward.1} parent=1 // pred_check
      _
    $region31: #{ccm_forward.1} parent=1 // pred_check_branch
      %71 = sbr.rel (0) target = $region33
    $region32: #{ccm_forward.1} parent=1 // pred_region
      %73 = dma.done [#allocation6], 1024
    $region33: #{ccm_forward.1} parent=1 // pred_fallthru
      _
    // Predicated region
    $region34: #{ccm_forward.1} parent=1 // pred_check
      _
    $region35: #{ccm_forward.1} parent=1 // pred_check_branch
      %75 = sbr.rel (0) target = $region37
    $region36: #{ccm_forward.1} parent=1 // pred_region
      %77 = dma.done [#allocation6], 1024
    $region37: #{ccm_forward.1} parent=1 // pred_fallthru
      _
    // Predicated region
    $region38: #{ccm_forward.1} parent=1 // pred_check
      _
    $region39: #{ccm_forward.1} parent=1 // pred_check_branch
      %79 = sbr.rel (0) target = $region41
    $region40: #{ccm_forward.1} parent=1 // pred_region
      %81 = dma.done [#allocation4], 16
    $region41: #{ccm_forward.1} parent=1 // pred_fallthru
      _
    %82 = sfence
    %v83 = vld [vmem:[%s0] sm:$0x1]
    %v84 = vpack.c.bf16 %v83, %v83
    %v85 = vld [vmem:[#allocation2] sm:$0xf]
    %v86 = vld [vmem:[#allocation2 + $0x4] sm:$0xf]
    %v87 = vld [vmem:[#allocation2 + $0x8] sm:$0xf]
    %v88 = vld [vmem:[#allocation2 + $0xc] sm:$0xf]
    %v89 = vld [vmem:[#allocation2 + $0x10] sm:$0xf]
    %v90 = vld [vmem:[#allocation2 + $0x14] sm:$0xf]
    %v91 = vld [vmem:[#allocation2 + $0x18] sm:$0xf]
    %v92 = vld [vmem:[#allocation2 + $0x1c] sm:$0xf]
    %v93 = vld [vmem:[#allocation2 + $0x20] sm:$0xf]
    %v94 = vld [vmem:[#allocation2 + $0x24] sm:$0xf]
    %v95 = vld [vmem:[#allocation2 + $0x28] sm:$0xf]
    %v96 = vld [vmem:[#allocation2 + $0x2c] sm:$0xf]
    %v97 = vld [vmem:[#allocation2 + $0x30] sm:$0xf]
    %v98 = vld [vmem:[#allocation2 + $0x34] sm:$0xf]
    %v99 = vld [vmem:[#allocation2 + $0x38] sm:$0xf]
    %v100 = vld [vmem:[#allocation2 + $0x3c] sm:$0xf]
    %s101 = sld [smem:[#allocation8]]
    %v102 = vstv %s101
    %v119 = vunpack.c.l.b16 %v85
    %v120 = vunpack.c.l.b16 %v86
    %v121 = vunpack.c.l.b16 %v87
    %v122 = vunpack.c.l.b16 %v88
    %v123 = vunpack.c.l.b16 %v89
    %v124 = vunpack.c.l.b16 %v90
    %v125 = vunpack.c.l.b16 %v91
    %v126 = vunpack.c.l.b16 %v92
    %v127 = vunpack.c.l.b16 %v93
    %v128 = vunpack.c.l.b16 %v94
    %v129 = vunpack.c.l.b16 %v95
    %v130 = vunpack.c.l.b16 %v96
    %v131 = vunpack.c.l.b16 %v97
    %v132 = vunpack.c.l.b16 %v98
    %v133 = vunpack.c.l.b16 %v99
    %v134 = vunpack.c.l.b16 %v100
    %v135 = vpack.c.b16 %v120, %v119
    %v136 = vpack.c.b16 %v122, %v121
    %v137 = vpack.c.b16 %v124, %v123
    %v138 = vpack.c.b16 %v126, %v125
    %v139 = vpack.c.b16 %v128, %v127
    %v140 = vpack.c.b16 %v130, %v129
    %v141 = vpack.c.b16 %v132, %v131
    %v142 = vpack.c.b16 %v134, %v133
    %151 = vmatpush.bf16.msra.mxu0 %v142
    %152 = vmatpush.bf16.msra.mxu0 %v141
    %153 = vmatpush.bf16.msra.mxu0 %v140
    %154 = vmatpush.bf16.msra.mxu0 %v139
    %155 = vmatpush.bf16.msra.mxu0 %v138
    %156 = vmatpush.bf16.msra.mxu0 %v137
    %157 = vmatpush.bf16.msra.mxu0 %v136
    %158 = vmatpush.bf16.msra.mxu0 %v135
    %159 = vmatmul.bf16.gmra.mxu0 %v84
    %v160 = vpop.f32.mrf.mxu0
    %v161 = vadd.f32 %v102, %v160
    %v162 = vpop.f32.mrf.mxu0
    %163 = vdwg.mxu0
    %vm164 = vcmask 1040384
    %v165 = vsel %vm164, %v83, 0.0
    %166 = vadd.xlane.f32.xlu0 %v165
    %v167 = vpop.xlane.xlu0 %166
    %v168 = vrot.slane %v167, 4
    %v169 = vadd.f32 %v167, %v168
    %v170 = vrot.slane %v169, 2
    %v171 = vadd.f32 %v169, %v170
    %v172 = vrot.slane %v171, 1
    %v173 = vadd.f32 %v171, %v172
    %s174 = vtos %v173
    %v175 = vrcp.pop 128.0
    %v176 = vmul.f32 128.0, %v175
    %v177 = vsub.f32 1.0, %v176
    %v178 = vmul.f32 %v175, %v177
    %v179 = vadd.f32 %v175, %v178
    %vm180 = vweird.f32 %v175
    %v181 = vsel %vm180, %v175, %v179
    %s182 = vtos %v181
    %s183 = smul.f32 %s174, %s182
    %v184 = vstv %s183
    %v185 = vsub.f32 %v83, %v184
    %v186 = vmul.f32 %v185, %v185
    %v187 = vsel %vm164, %v186, 0.0
    %188 = vadd.xlane.f32.xlu0 %v187
    %v189 = vpop.xlane.xlu0 %188
    %v190 = vrot.slane %v189, 4
    %v191 = vadd.f32 %v189, %v190
    %v192 = vrot.slane %v191, 2
    %v193 = vadd.f32 %v191, %v192
    %v194 = vrot.slane %v193, 1
    %v195 = vadd.f32 %v193, %v194
    %s196 = vtos %v195
    %v197 = vrcp.pop 128.0
    %v198 = vmul.f32 128.0, %v197
    %v199 = vsub.f32 1.0, %v198
    %v200 = vmul.f32 %v197, %v199
    %v201 = vadd.f32 %v197, %v200
    %vm202 = vweird.f32 %v197
    %v203 = vsel %vm202, %v197, %v201
    %s204 = vtos %v203
    %s205 = smul.f32 %s196, %s204
    %s206 = sadd.f32 %s205, 1e-05
    %v207 = vstv %s206
    %v208 = vrsqrt.pop %v207
    %v209 = vmul.f32 %v208, %v207
    %v210 = vmul.f32 %v209, %v208
    %v211 = vmul.f32 0.5, %v210
    %v212 = vsub.f32 1.5, %v211
    %v213 = vmul.f32 %v208, %v212
    %vm214 = vweird.f32 %v207
    %vm215 = vweird.f32 %v208
    %vm216 = vmor %vm214, %vm215
    %v217 = vsel %vm216, %v208, %v213
    %s218 = vtos %v217
    %s219 = sld [smem:[#allocation8 + $0x1]]
    %s220 = smul.f32 %s218, %s219
    %v221 = vstv %s220
    %v222 = vmul.f32 %v185, %v221
    %s223 = sld [smem:[#allocation8 + $0x2]]
    %v224 = vstv %s223
    %v225 = vadd.f32 %v222, %v224
    %v226 = vpack.c.bf16 %v225, %v225
    %v227 = vld [vmem:[#allocation5] sm:$0xf]
    %v228 = vld [vmem:[#allocation5 + $0x4] sm:$0xf]
    %v229 = vld [vmem:[#allocation5 + $0x8] sm:$0xf]
    %v230 = vld [vmem:[#allocation5 + $0xc] sm:$0xf]
    %v231 = vld [vmem:[#allocation5 + $0x10] sm:$0xf]
    %v232 = vld [vmem:[#allocation5 + $0x14] sm:$0xf]
    %v233 = vld [vmem:[#allocation5 + $0x18] sm:$0xf]
    %v234 = vld [vmem:[#allocation5 + $0x1c] sm:$0xf]
    %v235 = vld [vmem:[#allocation5 + $0x20] sm:$0xf]
    %v236 = vld [vmem:[#allocation5 + $0x24] sm:$0xf]
    %v237 = vld [vmem:[#allocation5 + $0x28] sm:$0xf]
    %v238 = vld [vmem:[#allocation5 + $0x2c] sm:$0xf]
    %v239 = vld [vmem:[#allocation5 + $0x30] sm:$0xf]
    %v240 = vld [vmem:[#allocation5 + $0x34] sm:$0xf]
    %v241 = vld [vmem:[#allocation5 + $0x38] sm:$0xf]
    %v242 = vld [vmem:[#allocation5 + $0x3c] sm:$0xf]
    %v243 = vld [vmem:[%s4] sm:$0x1]
    %v260 = vunpack.c.l.b16 %v227
    %v261 = vunpack.c.l.b16 %v228
    %v262 = vunpack.c.l.b16 %v229
    %v263 = vunpack.c.l.b16 %v230
    %v264 = vunpack.c.l.b16 %v231
    %v265 = vunpack.c.l.b16 %v232
    %v266 = vunpack.c.l.b16 %v233
    %v267 = vunpack.c.l.b16 %v234
    %v268 = vunpack.c.l.b16 %v235
    %v269 = vunpack.c.l.b16 %v236
    %v270 = vunpack.c.l.b16 %v237
    %v271 = vunpack.c.l.b16 %v238
    %v272 = vunpack.c.l.b16 %v239
    %v273 = vunpack.c.l.b16 %v240
    %v274 = vunpack.c.l.b16 %v241
    %v275 = vunpack.c.l.b16 %v242
    %v276 = vpack.c.b16 %v261, %v260
    %v277 = vpack.c.b16 %v263, %v262
    %v278 = vpack.c.b16 %v265, %v264
    %v279 = vpack.c.b16 %v267, %v266
    %v280 = vpack.c.b16 %v269, %v268
    %v281 = vpack.c.b16 %v271, %v270
    %v282 = vpack.c.b16 %v273, %v272
    %v283 = vpack.c.b16 %v275, %v274
    %292 = vmatpush.bf16.msra.mxu0 %v283
    %293 = vmatpush.bf16.msra.mxu0 %v282
    %294 = vmatpush.bf16.msra.mxu0 %v281
    %295 = vmatpush.bf16.msra.mxu0 %v280
    %296 = vmatpush.bf16.msra.mxu0 %v279
    %297 = vmatpush.bf16.msra.mxu0 %v278
    %298 = vmatpush.bf16.msra.mxu0 %v277
    %299 = vmatpush.bf16.msra.mxu0 %v276
    %300 = vmatmul.bf16.gmra.mxu0 %v226
    %v301 = vpop.f32.mrf.mxu0
    %v302 = vadd.f32 %v243, %v301
    %v303 = vpop.f32.mrf.mxu0
    %304 = vdwg.mxu0
    %v305 = vadd.f32 %v302, %v83
    %v306 = vpack.c.bf16 %v305, %v305
    %v307 = vld [vmem:[#allocation7] sm:$0xf]
    %v308 = vld [vmem:[#allocation7 + $0x4] sm:$0xf]
    %v309 = vld [vmem:[#allocation7 + $0x8] sm:$0xf]
    %v310 = vld [vmem:[#allocation7 + $0xc] sm:$0xf]
    %v311 = vld [vmem:[#allocation7 + $0x10] sm:$0xf]
    %v312 = vld [vmem:[#allocation7 + $0x14] sm:$0xf]
    %v313 = vld [vmem:[#allocation7 + $0x18] sm:$0xf]
    %v314 = vld [vmem:[#allocation7 + $0x1c] sm:$0xf]
    %v315 = vld [vmem:[#allocation7 + $0x20] sm:$0xf]
    %v316 = vld [vmem:[#allocation7 + $0x24] sm:$0xf]
    %v317 = vld [vmem:[#allocation7 + $0x28] sm:$0xf]
    %v318 = vld [vmem:[#allocation7 + $0x2c] sm:$0xf]
    %v319 = vld [vmem:[#allocation7 + $0x30] sm:$0xf]
    %v320 = vld [vmem:[#allocation7 + $0x34] sm:$0xf]
    %v321 = vld [vmem:[#allocation7 + $0x38] sm:$0xf]
    %v322 = vld [vmem:[#allocation7 + $0x3c] sm:$0xf]
    %s323 = sld [smem:[#allocation8 + $0x3]]
    %v324 = vstv %s323
    %v341 = vunpack.c.l.b16 %v307
    %v342 = vunpack.c.l.b16 %v308
    %v343 = vunpack.c.l.b16 %v309
    %v344 = vunpack.c.l.b16 %v310
    %v345 = vunpack.c.l.b16 %v311
    %v346 = vunpack.c.l.b16 %v312
    %v347 = vunpack.c.l.b16 %v313
    %v348 = vunpack.c.l.b16 %v314
    %v349 = vunpack.c.l.b16 %v315
    %v350 = vunpack.c.l.b16 %v316
    %v351 = vunpack.c.l.b16 %v317
    %v352 = vunpack.c.l.b16 %v318
    %v353 = vunpack.c.l.b16 %v319
    %v354 = vunpack.c.l.b16 %v320
    %v355 = vunpack.c.l.b16 %v321
    %v356 = vunpack.c.l.b16 %v322
    %v357 = vpack.c.b16 %v342, %v341
    %v358 = vpack.c.b16 %v344, %v343
    %v359 = vpack.c.b16 %v346, %v345
    %v360 = vpack.c.b16 %v348, %v347
    %v361 = vpack.c.b16 %v350, %v349
    %v362 = vpack.c.b16 %v352, %v351
    %v363 = vpack.c.b16 %v354, %v353
    %v364 = vpack.c.b16 %v356, %v355
    %373 = vmatpush.bf16.msra.mxu0 %v364
    %374 = vmatpush.bf16.msra.mxu0 %v363
    %375 = vmatpush.bf16.msra.mxu0 %v362
    %376 = vmatpush.bf16.msra.mxu0 %v361
    %377 = vmatpush.bf16.msra.mxu0 %v360
    %378 = vmatpush.bf16.msra.mxu0 %v359
    %379 = vmatpush.bf16.msra.mxu0 %v358
    %380 = vmatpush.bf16.msra.mxu0 %v357
    %381 = vmatmul.bf16.gmra.mxu0 %v306
    %v382 = vpop.f32.mrf.mxu0
    %v383 = vadd.f32 %v324, %v382
    %v384 = vpop.f32.mrf.mxu0
    %385 = vdwg.mxu0
    %v386 = vadd.f32 %v383, %v305
    %v387 = vmul.f32 %v161, 2.0
    %v388 = vmul.f32 %v387, %v386
    %389 = vst [vmem:[%s6] sm:$0x1] %v388
    // Predicated region
    $region42: #{ccm_forward.1} parent=1 // pred_check
      _
    $region43: #{ccm_forward.1} parent=1 // pred_check_branch
      %391 = sbr.rel (0) target = $region45
    $region44: #{ccm_forward.1} parent=1 // pred_region
      _
    $region45: #{ccm_forward.1} parent=1 // pred_fallthru
      _
    // Predicated region
    $region46: #{ccm_forward.1} parent=1 // pred_check
      _
    $region47: #{ccm_forward.1} parent=1 // pred_check_branch
      %393 = sbr.rel (0) target = $region49
    $region48: #{ccm_forward.1} parent=1 // pred_region
      _
    $region49: #{ccm_forward.1} parent=1 // pred_fallthru
      _
    %394 = vsyncpa [#allocation3], 1
    %395 = vsyncpa [#allocation6], 1
    %396 = vsyncpa [#allocation4], 1

</llo_original>
